<compile_context>
chip_gen: v5e
topology: v5e:2x2
jax: 0.10.0
libtpu: 0.0.40
codegen_flags: <defaults>
</compile_context>

<pallas_src>
import math
import functools

import jax
import jax.numpy as jnp
from jax.experimental import pallas as pl
from jax.experimental.pallas import tpu as pltpu


def _round_up(x: int, k: int) -> int:
    return ((x + k - 1) // k) * k


def _kde_kernel(x_ref, yt_ref, o_ref, acc_ref, *, log_scale: float):
    # x_ref: (tn, d_aug) augmented fit-point tile
    # yt_ref: (d_aug, tm) augmented, pre-transposed query-point tile
    j = pl.program_id(1)

    @pl.when(j == 0)
    def _init():
        acc_ref[...] = jnp.zeros_like(acc_ref)

    # One MXU contraction produces the complete exp argument:
    #   arg[i,j] = x_i.y_j + a_i + b_j = -0.5||x_i - y_j||^2 + logC - log n
    arg = jnp.dot(x_ref[...], yt_ref[...],
                  preferred_element_type=jnp.float32)            # (tn, tm)
    # True squared distance >= 0, so arg can never exceed log_scale; clamp to
    # guard catastrophic cancellation in the expanded form.
    dens = jnp.exp(jnp.minimum(arg, log_scale))                  # (tn, tm)

    acc_ref[...] += jnp.sum(dens, axis=-1, keepdims=True)        # (tn, 1)

    @pl.when(j == pl.num_programs(1) - 1)
    def _finalize():
        o_ref[...] = acc_ref[...].astype(o_ref.dtype)


def _tensorcores_per_device() -> int:
    # v7x exposes 2 TensorCores behind one device (megacore-style sharding of
    # "parallel" grid axes); v5e/v6e are single-TC.  Detection failure -> 1.
    try:
        dev = jax.devices()[0]
        if dev.platform != "tpu":
            return 1
        kind = str(getattr(dev, "device_kind", "")).lower()
        return 2 if "v7" in kind else 1
    except Exception:  # pragma: no cover
        return 1


def _pick_tiles(n: int, m: int, d_aug: int, cores: int) -> tuple[int, int]:
    TN_MAX, TM_MAX = 256, 8192
    # Keep the sublane-padded (d_aug, tm) f32 Y tile under ~4 MiB per buffer so
    # large-d problems don't blow VMEM.
    d_sub = _round_up(d_aug, 8)
    tm_cap = max(128, min(TM_MAX, ((4 << 20) // (4 * d_sub)) // 128 * 128))
    # Balance m tiles (multiple of 128) so padding waste stays small.
    m_steps = max(1, -(-m // tm_cap))
    tm = _round_up(-(-m // m_steps), 128)

    # n axis is "parallel": give every TensorCore at least one step (only
    # matters on 2-TC parts); otherwise balance tiles (multiple of 8).
    min_n_steps = cores if n >= 8 * cores else 1
    n_steps = max(min_n_steps, -(-n // TN_MAX))
    tn = _round_up(-(-n // n_steps), 8)
    return tn, tm


def gaussian_kde_score_samples(X: jax.Array, Y: jax.Array,
                               *, tn: int | None = None,
                               tm: int | None = None) -> jax.Array:
    """Pallas implementation of GaussianKDE.forward / score_samples.

    X: (n, d) fit points.  Y: (m, d) query points.  Returns (n,) float32.
    """
    n, d = X.shape
    m, d2 = Y.shape
    assert d == d2, "X and Y must share the feature dimension"

    # Compute in f32 (matches PyTorch defaults; keeps the augmented bias
    # columns at full precision in the exponent).
    Xf = X.astype(jnp.float32)
    Yf = Y.astype(jnp.float32)

    # log( (2*pi)^(-d/2) / n )  — per-term scale folded into the exponent.
    log_scale = -0.5 * d * math.log(2.0 * math.pi) - math.log(float(n))
    d_aug = d + 2

    cores = _tensorcores_per_device()
    auto_tn, auto_tm = _pick_tiles(n, m, d_aug, cores)
    tn = auto_tn if tn is None else tn
    tm = auto_tm if tm is None else tm
    n_pad = _round_up(n, tn)
    m_pad = _round_up(m, tm)
    # TODO(synk): v7x small-n/large-m regime could additionally split the m
    # reduction across the two TensorCores (size-2 parallel axis + partial-sum
    # epilogue) to avoid leaving one core idle when n fits in a single tile.

    # --- augmented operands, built once in plain XLA -------------------------
    a = -0.5 * jnp.sum(Xf * Xf, axis=1, keepdims=True) + log_scale   # (n, 1)
    b = -0.5 * jnp.sum(Yf * Yf, axis=1, keepdims=True)               # (m, 1)

    Xp = jnp.pad(Xf, ((0, n_pad - n), (0, 0)))
    ap = jnp.pad(a, ((0, n_pad - n), (0, 0)), constant_values=log_scale)
    x_aug = jnp.concatenate(
        [Xp, ap, jnp.ones((n_pad, 1), jnp.float32)], axis=1)        # (n_pad, d_aug)

    Yp = jnp.pad(Yf, ((0, m_pad - m), (0, 0)))
    # Padded query rows must contribute exactly 0: a huge negative bias makes
    # exp underflow to 0 in f32 (finite -> no inf/nan through the matmul).
    bp = jnp.pad(b, ((0, m_pad - m), (0, 0)), constant_values=-1.0e30)
    y_aug_t = jnp.concatenate(
        [Yp, jnp.ones((m_pad, 1), jnp.float32), bp], axis=1).T      # (d_aug, m_pad)

    kernel = functools.partial(_kde_kernel, log_scale=log_scale)
    out = pl.pallas_call(
        kernel,
        out_shape=jax.ShapeDtypeStruct((n_pad, 1), jnp.float32),
        grid_spec=pltpu.PrefetchScalarGridSpec(
            num_scalar_prefetch=0,
            grid=(n_pad // tn, m_pad // tm),
            in_specs=[
                pl.BlockSpec((tn, d_aug), lambda i, j: (i, 0)),   # X_aug tile
                pl.BlockSpec((d_aug, tm), lambda i, j: (0, j)),   # Y_aug^T tile
            ],
            out_specs=pl.BlockSpec((tn, 1), lambda i, j: (i, 0)),
            scratch_shapes=[pltpu.VMEM((tn, 1), jnp.float32)],
        ),
        compiler_params=pltpu.CompilerParams(
            dimension_semantics=("parallel", "arbitrary"),
            vmem_limit_bytes=48 * 1024 * 1024),
    )(x_aug, y_aug_t)
    return out[:n, 0]


def _reference(X, Y):
    # Pure-JAX reference mirroring the PyTorch code.
    d = X.shape[-1]
    n = X.shape[0]
    diff = X[:, None, :] - Y[None, :, :]                               # (n, m, d)
    logp = -0.5 * jnp.sum(diff * diff, axis=-1) \
           - 0.5 * d * math.log(2.0 * math.pi)                         # (n, m)
    return jnp.sum(jnp.exp(logp), axis=1) / n                          # (n,)


if __name__ == "__main__":
    key = jax.random.PRNGKey(0)
    k1, k2, k3, k4 = jax.random.split(key, 4)

    # Case 1: module-sized shapes (n=m=128, d=8).
    n, m, d = 128, 128, 8
    X = jax.random.normal(k1, (n, d), dtype=jnp.float32) * 0.5
    samples = jax.random.normal(k2, (m, d), dtype=jnp.float32) * 0.5

    out = jax.block_until_ready(gaussian_kde_score_samples(X, samples))
    ref = _reference(X, samples)
    assert out.shape == (n,)
    assert jnp.allclose(out, ref, rtol=2e-5, atol=1e-6), "case1 mismatch"

    # Case 2: ragged shapes to exercise the padding/masking path.
    n2, m2, d2 = 100, 200, 5
    X2 = jax.random.normal(k3, (n2, d2), dtype=jnp.float32) * 0.5
    samples2 = jax.random.normal(k4, (m2, d2), dtype=jnp.float32) * 0.5

    out2 = jax.block_until_ready(gaussian_kde_score_samples(X2, samples2))
    ref2 = _reference(X2, samples2)
    assert out2.shape == (n2,)
    assert jnp.allclose(out2, ref2, rtol=2e-5, atol=1e-6), "case2 mismatch"

    print("KERNEL_OK")
</pallas_src>

<mosaic_0001>
module attributes {stable_mosaic.version = 11 : i64} {
  func.func @_kde_kernel(%arg0: i32, %arg1: i32, %arg2: memref<128x10xf32, #tpu.memory_space<vmem>>, %arg3: memref<10x128xf32, #tpu.memory_space<vmem>>, %arg4: memref<128x1xf32, #tpu.memory_space<vmem>>, %arg5: memref<128x1xf32, #tpu.memory_space<vmem>>) attributes {dimension_semantics = [#tpu.dimension_semantics<parallel>, #tpu.dimension_semantics<arbitrary>], iteration_bounds = array<i64: 1, 1>, scalar_prefetch = 0 : i64, scratch_operands = 1 : i64, tpu.core_type = #tpu.core_type<tc>, window_params = [{transform_indices = @transform_0, window_bounds = array<i64: 128, 10>}, {transform_indices = @transform_1, window_bounds = array<i64: 10, 128>}, {transform_indices = @transform_2, window_bounds = array<i64: 128, 1>}]} {
    %c0_i32 = arith.constant 0 : i32
    %0 = arith.cmpi eq, %arg1, %c0_i32 : i32
    %1 = arith.extui %0 : i1 to i32
    %c0_i32_0 = arith.constant 0 : i32
    %2 = arith.cmpi ne, %1, %c0_i32_0 : i32
    scf.if %2 {
      %cst_12 = arith.constant 0.000000e+00 : f32
      %17 = vector.broadcast %cst_12 : f32 to vector<128x1xf32>
      %c0_13 = arith.constant 0 : index
      %c0_14 = arith.constant 0 : index
      %18 = vector.load %arg5[%c0_13, %c0_14] : memref<128x1xf32, #tpu.memory_space<vmem>>, vector<128x1xf32>
      tpu.vector_store %arg5[%c0_13, %c0_14], %17 {strides = array<i32>} : memref<128x1xf32, #tpu.memory_space<vmem>>, vector<128x1xf32>,
    } else {
    }
    %c0 = arith.constant 0 : index
    %c0_1 = arith.constant 0 : index
    %3 = vector.load %arg2[%c0, %c0_1] : memref<128x10xf32, #tpu.memory_space<vmem>>, vector<128x10xf32>
    %c0_2 = arith.constant 0 : index
    %c0_3 = arith.constant 0 : index
    %4 = vector.load %arg3[%c0_2, %c0_3] : memref<10x128xf32, #tpu.memory_space<vmem>>, vector<10x128xf32>
    %cst = arith.constant dense<0.000000e+00> : vector<128x128xf32>
    %5 = tpu.matmul %3, %4, %cst {dimension_numbers = #tpu.dot_dimension_numbers<[1], [0], [0], [1], [0, 0, 1, 1], [], []>} : vector<128x10xf32>, vector<10x128xf32>, vector<128x128xf32> -> vector<128x128xf32>
    %cst_4 = arith.constant -12.2035389 : f32
    %6 = vector.broadcast %cst_4 : f32 to vector<128x128xf32>
    %7 = arith.minimumf %5, %6 : vector<128x128xf32>
    %8 = math.exp %7 : vector<128x128xf32>
    %c0_5 = arith.constant 0 : index
    %c0_6 = arith.constant 0 : index
    %9 = vector.load %arg5[%c0_5, %c0_6] : memref<128x1xf32, #tpu.memory_space<vmem>>, vector<128x1xf32>
    %cst_7 = arith.constant dense<0.000000e+00> : vector<128xf32>
    %10 = vector.multi_reduction <add>, %8, %cst_7 [1] : vector<128x128xf32> to vector<128xf32>
    %11 = vector.shape_cast %10 : vector<128xf32> to vector<128x1xf32>
    %12 = arith.addf %9, %11 : vector<128x1xf32>
    %c0_8 = arith.constant 0 : index
    %c0_9 = arith.constant 0 : index
    %13 = vector.load %arg5[%c0_8, %c0_9] : memref<128x1xf32, #tpu.memory_space<vmem>>, vector<128x1xf32>
    tpu.vector_store %arg5[%c0_8, %c0_9], %12 {strides = array<i32>} : memref<128x1xf32, #tpu.memory_space<vmem>>, vector<128x1xf32>,
    %c0_i32_10 = arith.constant 0 : i32
    %14 = arith.cmpi eq, %arg1, %c0_i32_10 : i32
    %15 = arith.extui %14 : i1 to i32
    %c0_i32_11 = arith.constant 0 : i32
    %16 = arith.cmpi ne, %15, %c0_i32_11 : i32
    scf.if %16 {
      %c0_12 = arith.constant 0 : index
      %c0_13 = arith.constant 0 : index
      %17 = vector.load %arg5[%c0_12, %c0_13] : memref<128x1xf32, #tpu.memory_space<vmem>>, vector<128x1xf32>
      %c0_14 = arith.constant 0 : index
      %c0_15 = arith.constant 0 : index
      %18 = vector.load %arg4[%c0_14, %c0_15] : memref<128x1xf32, #tpu.memory_space<vmem>>, vector<128x1xf32>
      tpu.vector_store %arg4[%c0_14, %c0_15], %17 {strides = array<i32>} : memref<128x1xf32, #tpu.memory_space<vmem>>, vector<128x1xf32>,
    } else {
    }
    return
  }
  func.func @transform_0(%arg0: i32, %arg1: i32) -> (i32, i32) {
    %c0_i32 = arith.constant 0 : i32
    %c0_i32_0 = arith.constant 0 : i32
    return %arg0, %c0_i32 : i32, i32
  }
  func.func @transform_1(%arg0: i32, %arg1: i32) -> (i32, i32) {
    %c0_i32 = arith.constant 0 : i32
    %c0_i32_0 = arith.constant 0 : i32
    return %c0_i32, %arg1 : i32, i32
  }
  func.func @transform_2(%arg0: i32, %arg1: i32) -> (i32, i32) {
    %c0_i32 = arith.constant 0 : i32
    %c0_i32_0 = arith.constant 0 : i32
    return %arg0, %c0_i32 : i32, i32
  }
}

</mosaic_0001>

<llo_original>
// kernel: tpu_custom_call.1
$region0: #{tpu_custom_call.1}
  #allocation0 [shape = 'u32[]', space=smem, size = 0x4, offset = 0x4, fixed_abs, tag = 'smem constant byte address 0x4 - core index']
  #allocation1 [shape = 'u32[72,128]{1,0:T(1,128)}', space=vmem, size = 0x9000, scoped, tag = 'internal scratch']
  #allocation2 [shape = 'f32[128,1]{1,0:T(8,128)}', space=vmem, size = 0x10000, scoped, tag = 'scratch operand']
  %s0 = inlined_call_operand.vmem [shape: f32[128,10], index: 0, kind: input, shape index: {}]
  %s1 = inlined_call_operand.vmem [shape: f32[10,128], index: 1, kind: input, shape index: {}]
  %s2 = inlined_call_operand.vmem [shape: f32[128,1], index: 2, kind: output, shape index: {}]
  %s3 = sld [smem:[#allocation0]]
  $region26: #{tpu_custom_call.1} parent=0
    _
  %s5 = ssub.s32 1, %s3
  %s6 = scalar_select 0, %s5, %s3
  // Predicated region
  $region2: #{tpu_custom_call.1} parent=0 // pred_check
    _
  $region3: #{tpu_custom_call.1} parent=0 // pred_check_branch
    %8 = sbr.rel (0) target = $region5
  $region4: #{tpu_custom_call.1} parent=0 // pred_region
    _
  $region5: #{tpu_custom_call.1} parent=0 // pred_fallthru
    _
  // Predicated region
  $region6: #{tpu_custom_call.1} parent=0 // pred_check
    _
  $region7: #{tpu_custom_call.1} parent=0 // pred_check_branch
    %10 = sbr.rel (0) target = $region9
  $region8: #{tpu_custom_call.1} parent=0 // pred_region
    _
  $region9: #{tpu_custom_call.1} parent=0 // pred_fallthru
    _
  %p11 = scmp.eq.s32.totalorder 0, 0
  // Predicated region
  $region10: #{tpu_custom_call.1} parent=0 // pred_check
    %p12 = pneg %p11
  $region11: #{tpu_custom_call.1} parent=0 // pred_check_branch
    %14 = sbr.rel (%p12) target = $region13
  $region12: #{tpu_custom_call.1} parent=0 // pred_region
    %vm15 = vcmask 7168
    %16 = vst.msk [vmem:[#allocation2] sm:$0xff] %vm15, 0.0
    %17 = vst.msk [vmem:[#allocation2 + $0x8] sm:$0xff] %vm15, 0.0
    %18 = vst.msk [vmem:[#allocation2 + $0x10] sm:$0xff] %vm15, 0.0
    %19 = vst.msk [vmem:[#allocation2 + $0x18] sm:$0xff] %vm15, 0.0
    %20 = vst.msk [vmem:[#allocation2 + $0x20] sm:$0xff] %vm15, 0.0
    %21 = vst.msk [vmem:[#allocation2 + $0x28] sm:$0xff] %vm15, 0.0
    %22 = vst.msk [vmem:[#allocation2 + $0x30] sm:$0xff] %vm15, 0.0
    %23 = vst.msk [vmem:[#allocation2 + $0x38] sm:$0xff] %vm15, 0.0
    %24 = vst.msk [vmem:[#allocation2 + $0x40] sm:$0xff] %vm15, 0.0
    %25 = vst.msk [vmem:[#allocation2 + $0x48] sm:$0xff] %vm15, 0.0
    %26 = vst.msk [vmem:[#allocation2 + $0x50] sm:$0xff] %vm15, 0.0
    %27 = vst.msk [vmem:[#allocation2 + $0x58] sm:$0xff] %vm15, 0.0
    %28 = vst.msk [vmem:[#allocation2 + $0x60] sm:$0xff] %vm15, 0.0
    %29 = vst.msk [vmem:[#allocation2 + $0x68] sm:$0xff] %vm15, 0.0
    %30 = vst.msk [vmem:[#allocation2 + $0x70] sm:$0xff] %vm15, 0.0
    %31 = vst.msk [vmem:[#allocation2 + $0x78] sm:$0xff] %vm15, 0.0
  $region13: #{tpu_custom_call.1} parent=0 // pred_fallthru
    _
  %v32 = vld [vmem:[%s0] sm:$0xff]
  %v33 = vld [vmem:[%s0 + $0x8] sm:$0xff]
  %v34 = vld [vmem:[%s0 + $0x10] sm:$0xff]
  %v35 = vld [vmem:[%s0 + $0x18] sm:$0xff]
  %v36 = vld [vmem:[%s0 + $0x20] sm:$0xff]
  %v37 = vld [vmem:[%s0 + $0x28] sm:$0xff]
  %v38 = vld [vmem:[%s0 + $0x30] sm:$0xff]
  %v39 = vld [vmem:[%s0 + $0x38] sm:$0xff]
  %v40 = vld [vmem:[%s0 + $0x40] sm:$0xff]
  %v41 = vld [vmem:[%s0 + $0x48] sm:$0xff]
  %v42 = vld [vmem:[%s0 + $0x50] sm:$0xff]
  %v43 = vld [vmem:[%s0 + $0x58] sm:$0xff]
  %v44 = vld [vmem:[%s0 + $0x60] sm:$0xff]
  %v45 = vld [vmem:[%s0 + $0x68] sm:$0xff]
  %v46 = vld [vmem:[%s0 + $0x70] sm:$0xff]
  %v47 = vld [vmem:[%s0 + $0x78] sm:$0xff]
  %v48 = vld [vmem:[%s1] sm:$0xff]
  %v49 = vld [vmem:[%s1 + $0x8] sm:$0x3]
  %vm50 = vcmask 80896
  %v52 = vsel %vm50, %v32, 0
  %v55 = vsel %vm50, %v33, 0
  %v58 = vsel %vm50, %v34, 0
  %v61 = vsel %vm50, %v35, 0
  %v64 = vsel %vm50, %v36, 0
  %v67 = vsel %vm50, %v37, 0
  %v70 = vsel %vm50, %v38, 0
  %v73 = vsel %vm50, %v39, 0
  %v76 = vsel %vm50, %v40, 0
  %v79 = vsel %vm50, %v41, 0
  %v82 = vsel %vm50, %v42, 0
  %v85 = vsel %vm50, %v43, 0
  %v88 = vsel %vm50, %v44, 0
  %v91 = vsel %vm50, %v45, 0
  %v94 = vsel %vm50, %v46, 0
  %v97 = vsel %vm50, %v47, 0
  %vm99 = vcmask 1041408
  %v101 = vsel %vm99, %v49, 0
  %103 = vmatpush.msra.mxu0 0.0
  %104 = vmatpush.msra.mxu0 0.0
  %105 = vmatpush.msra.mxu0 0.0
  %106 = vmatpush.msra.mxu0 0.0
  %107 = vmatpush.msra.mxu0 0.0
  %108 = vmatpush.msra.mxu0 0.0
  %109 = vmatpush.msra.mxu0 0.0
  %110 = vmatpush.msra.mxu0 0.0
  %111 = vmatpush.msra.mxu0 0.0
  %112 = vmatpush.msra.mxu0 0.0
  %113 = vmatpush.msra.mxu0 0.0
  %114 = vmatpush.msra.mxu0 0.0
  %115 = vmatpush.msra.mxu0 0.0
  %116 = vmatpush.msra.mxu0 0.0
  %117 = vmatpush.msra.mxu0 %v101
  %118 = vmatpush.msra.mxu0 %v48
  %119 = vmatmul.f32.gmra.mxu0 %v52
  %v120 = vpop.f32.mrf.mxu0
  %v121 = vadd.f32 0.0, %v120
  %122 = vmatmul.f32.gmra.mxu0 %v55
  %v123 = vpop.f32.mrf.mxu0
  %v124 = vadd.f32 0.0, %v123
  %125 = vmatmul.f32.gmra.mxu0 %v58
  %v126 = vpop.f32.mrf.mxu0
  %v127 = vadd.f32 0.0, %v126
  %128 = vmatmul.f32.gmra.mxu0 %v61
  %v129 = vpop.f32.mrf.mxu0
  %v130 = vadd.f32 0.0, %v129
  %131 = vmatmul.f32.gmra.mxu0 %v64
  %v132 = vpop.f32.mrf.mxu0
  %v133 = vadd.f32 0.0, %v132
  %134 = vmatmul.f32.gmra.mxu0 %v67
  %v135 = vpop.f32.mrf.mxu0
  %v136 = vadd.f32 0.0, %v135
  %137 = vmatmul.f32.gmra.mxu0 %v70
  %v138 = vpop.f32.mrf.mxu0
  %v139 = vadd.f32 0.0, %v138
  %140 = vmatmul.f32.gmra.mxu0 %v73
  %v141 = vpop.f32.mrf.mxu0
  %v142 = vadd.f32 0.0, %v141
  %143 = vmatmul.f32.gmra.mxu0 %v76
  %v144 = vpop.f32.mrf.mxu0
  %v145 = vadd.f32 0.0, %v144
  %146 = vmatmul.f32.gmra.mxu0 %v79
  %v147 = vpop.f32.mrf.mxu0
  %v148 = vadd.f32 0.0, %v147
  %149 = vmatmul.f32.gmra.mxu0 %v82
  %v150 = vpop.f32.mrf.mxu0
  %v151 = vadd.f32 0.0, %v150
  %152 = vmatmul.f32.gmra.mxu0 %v85
  %v153 = vpop.f32.mrf.mxu0
  %v154 = vadd.f32 0.0, %v153
  %155 = vmatmul.f32.gmra.mxu0 %v88
  %v156 = vpop.f32.mrf.mxu0
  %v157 = vadd.f32 0.0, %v156
  %158 = vmatmul.f32.gmra.mxu0 %v91
  %v159 = vpop.f32.mrf.mxu0
  %v160 = vadd.f32 0.0, %v159
  %161 = vmatmul.f32.gmra.mxu0 %v94
  %v162 = vpop.f32.mrf.mxu0
  %v163 = vadd.f32 0.0, %v162
  %164 = vmatmul.f32.gmra.mxu0 %v97
  %v165 = vpop.f32.mrf.mxu0
  %v166 = vadd.f32 0.0, %v165
  %167 = vdwg.mxu0
  %v168 = vmin.f32 %v121, -12.203539
  %v169 = vmin.f32 %v124, -12.203539
  %v170 = vmin.f32 %v127, -12.203539
  %v171 = vmin.f32 %v130, -12.203539
  %v172 = vmin.f32 %v133, -12.203539
  %v173 = vmin.f32 %v136, -12.203539
  %v174 = vmin.f32 %v139, -12.203539
  %v175 = vmin.f32 %v142, -12.203539
  %v176 = vmin.f32 %v145, -12.203539
  %v177 = vmin.f32 %v148, -12.203539
  %v178 = vmin.f32 %v151, -12.203539
  %v179 = vmin.f32 %v154, -12.203539
  %v180 = vmin.f32 %v157, -12.203539
  %v181 = vmin.f32 %v160, -12.203539
  %v182 = vmin.f32 %v163, -12.203539
  %v183 = vmin.f32 %v166, -12.203539
  %v184 = vmul.f32 %v168, 1.442695
  %v185 = vpow.pop %v184
  %v186 = vmul.f32 %v169, 1.442695
  %v187 = vpow.pop %v186
  %v188 = vmul.f32 %v170, 1.442695
  %v189 = vpow.pop %v188
  %v190 = vmul.f32 %v171, 1.442695
  %v191 = vpow.pop %v190
  %v192 = vmul.f32 %v172, 1.442695
  %v193 = vpow.pop %v192
  %v194 = vmul.f32 %v173, 1.442695
  %v195 = vpow.pop %v194
  %v196 = vmul.f32 %v174, 1.442695
  %v197 = vpow.pop %v196
  %v198 = vmul.f32 %v175, 1.442695
  %v199 = vpow.pop %v198
  %v200 = vmul.f32 %v176, 1.442695
  %v201 = vpow.pop %v200
  %v202 = vmul.f32 %v177, 1.442695
  %v203 = vpow.pop %v202
  %v204 = vmul.f32 %v178, 1.442695
  %v205 = vpow.pop %v204
  %v206 = vmul.f32 %v179, 1.442695
  %v207 = vpow.pop %v206
  %v208 = vmul.f32 %v180, 1.442695
  %v209 = vpow.pop %v208
  %v210 = vmul.f32 %v181, 1.442695
  %v211 = vpow.pop %v210
  %v212 = vmul.f32 %v182, 1.442695
  %v213 = vpow.pop %v212
  %v214 = vmul.f32 %v183, 1.442695
  %v215 = vpow.pop %v214
  %v216 = vld [vmem:[#allocation2] sm:$0xff]
  %v217 = vld [vmem:[#allocation2 + $0x8] sm:$0xff]
  %v218 = vld [vmem:[#allocation2 + $0x10] sm:$0xff]
  %v219 = vld [vmem:[#allocation2 + $0x18] sm:$0xff]
  %v220 = vld [vmem:[#allocation2 + $0x20] sm:$0xff]
  %v221 = vld [vmem:[#allocation2 + $0x28] sm:$0xff]
  %v222 = vld [vmem:[#allocation2 + $0x30] sm:$0xff]
  %v223 = vld [vmem:[#allocation2 + $0x38] sm:$0xff]
  %v224 = vld [vmem:[#allocation2 + $0x40] sm:$0xff]
  %v225 = vld [vmem:[#allocation2 + $0x48] sm:$0xff]
  %v226 = vld [vmem:[#allocation2 + $0x50] sm:$0xff]
  %v227 = vld [vmem:[#allocation2 + $0x58] sm:$0xff]
  %v228 = vld [vmem:[#allocation2 + $0x60] sm:$0xff]
  %v229 = vld [vmem:[#allocation2 + $0x68] sm:$0xff]
  %v230 = vld [vmem:[#allocation2 + $0x70] sm:$0xff]
  %v231 = vld [vmem:[#allocation2 + $0x78] sm:$0xff]
  %232 = vadd.xlane.f32.xlu0 %v185
  %v233 = vpop.xlane.xlu0 %232
  %234 = vadd.xlane.f32.xlu0 %v187
  %v235 = vpop.xlane.xlu0 %234
  %236 = vadd.xlane.f32.xlu0 %v189
  %v237 = vpop.xlane.xlu0 %236
  %238 = vadd.xlane.f32.xlu0 %v191
  %v239 = vpop.xlane.xlu0 %238
  %240 = vadd.xlane.f32.xlu0 %v193
  %v241 = vpop.xlane.xlu0 %240
  %242 = vadd.xlane.f32.xlu0 %v195
  %v243 = vpop.xlane.xlu0 %242
  %244 = vadd.xlane.f32.xlu0 %v197
  %v245 = vpop.xlane.xlu0 %244
  %246 = vadd.xlane.f32.xlu0 %v199
  %v247 = vpop.xlane.xlu0 %246
  %248 = vadd.xlane.f32.xlu0 %v201
  %v249 = vpop.xlane.xlu0 %248
  %250 = vadd.xlane.f32.xlu0 %v203
  %v251 = vpop.xlane.xlu0 %250
  %252 = vadd.xlane.f32.xlu0 %v205
  %v253 = vpop.xlane.xlu0 %252
  %254 = vadd.xlane.f32.xlu0 %v207
  %v255 = vpop.xlane.xlu0 %254
  %256 = vadd.xlane.f32.xlu0 %v209
  %v257 = vpop.xlane.xlu0 %256
  %258 = vadd.xlane.f32.xlu0 %v211
  %v259 = vpop.xlane.xlu0 %258
  %260 = vadd.xlane.f32.xlu0 %v213
  %v261 = vpop.xlane.xlu0 %260
  %262 = vadd.xlane.f32.xlu0 %v215
  %v263 = vpop.xlane.xlu0 %262
  %v264 = vadd.f32 %v216, %v233
  %v265 = vadd.f32 %v217, %v235
  %v266 = vadd.f32 %v218, %v237
  %v267 = vadd.f32 %v219, %v239
  %v268 = vadd.f32 %v220, %v241
  %v269 = vadd.f32 %v221, %v243
  %v270 = vadd.f32 %v222, %v245
  %v271 = vadd.f32 %v223, %v247
  %v272 = vadd.f32 %v224, %v249
  %v273 = vadd.f32 %v225, %v251
  %v274 = vadd.f32 %v226, %v253
  %v275 = vadd.f32 %v227, %v255
  %v276 = vadd.f32 %v228, %v257
  %v277 = vadd.f32 %v229, %v259
  %v278 = vadd.f32 %v230, %v261
  %v279 = vadd.f32 %v231, %v263
  %vm280 = vcmask 7168
  %281 = vst.msk [vmem:[#allocation2] sm:$0xff] %vm280, %v264
  %282 = vst.msk [vmem:[#allocation2 + $0x8] sm:$0xff] %vm280, %v265
  %283 = vst.msk [vmem:[#allocation2 + $0x10] sm:$0xff] %vm280, %v266
  %284 = vst.msk [vmem:[#allocation2 + $0x18] sm:$0xff] %vm280, %v267
  %285 = vst.msk [vmem:[#allocation2 + $0x20] sm:$0xff] %vm280, %v268
  %286 = vst.msk [vmem:[#allocation2 + $0x28] sm:$0xff] %vm280, %v269
  %287 = vst.msk [vmem:[#allocation2 + $0x30] sm:$0xff] %vm280, %v270
  %288 = vst.msk [vmem:[#allocation2 + $0x38] sm:$0xff] %vm280, %v271
  %289 = vst.msk [vmem:[#allocation2 + $0x40] sm:$0xff] %vm280, %v272
  %290 = vst.msk [vmem:[#allocation2 + $0x48] sm:$0xff] %vm280, %v273
  %291 = vst.msk [vmem:[#allocation2 + $0x50] sm:$0xff] %vm280, %v274
  %292 = vst.msk [vmem:[#allocation2 + $0x58] sm:$0xff] %vm280, %v275
  %293 = vst.msk [vmem:[#allocation2 + $0x60] sm:$0xff] %vm280, %v276
  %294 = vst.msk [vmem:[#allocation2 + $0x68] sm:$0xff] %vm280, %v277
  %295 = vst.msk [vmem:[#allocation2 + $0x70] sm:$0xff] %vm280, %v278
  %296 = vst.msk [vmem:[#allocation2 + $0x78] sm:$0xff] %vm280, %v279
  // Predicated region
  $region14: #{tpu_custom_call.1} parent=0 // pred_check
    %p297 = pneg %p11
  $region15: #{tpu_custom_call.1} parent=0 // pred_check_branch
    %299 = sbr.rel (%p297) target = $region17
  $region16: #{tpu_custom_call.1} parent=0 // pred_region
    %v300 = vld [vmem:[#allocation2] sm:$0xff]
    %v301 = vld [vmem:[#allocation2 + $0x8] sm:$0xff]
    %v302 = vld [vmem:[#allocation2 + $0x10] sm:$0xff]
    %v303 = vld [vmem:[#allocation2 + $0x18] sm:$0xff]
    %v304 = vld [vmem:[#allocation2 + $0x20] sm:$0xff]
    %v305 = vld [vmem:[#allocation2 + $0x28] sm:$0xff]
    %v306 = vld [vmem:[#allocation2 + $0x30] sm:$0xff]
    %v307 = vld [vmem:[#allocation2 + $0x38] sm:$0xff]
    %v308 = vld [vmem:[#allocation2 + $0x40] sm:$0xff]
    %v309 = vld [vmem:[#allocation2 + $0x48] sm:$0xff]
    %v310 = vld [vmem:[#allocation2 + $0x50] sm:$0xff]
    %v311 = vld [vmem:[#allocation2 + $0x58] sm:$0xff]
    %v312 = vld [vmem:[#allocation2 + $0x60] sm:$0xff]
    %v313 = vld [vmem:[#allocation2 + $0x68] sm:$0xff]
    %v314 = vld [vmem:[#allocation2 + $0x70] sm:$0xff]
    %v315 = vld [vmem:[#allocation2 + $0x78] sm:$0xff]
    %316 = vst.msk [vmem:[%s2] sm:$0xff] %vm280, %v300
    %317 = vst.msk [vmem:[%s2 + $0x8] sm:$0xff] %vm280, %v301
    %318 = vst.msk [vmem:[%s2 + $0x10] sm:$0xff] %vm280, %v302
    %319 = vst.msk [vmem:[%s2 + $0x18] sm:$0xff] %vm280, %v303
    %320 = vst.msk [vmem:[%s2 + $0x20] sm:$0xff] %vm280, %v304
    %321 = vst.msk [vmem:[%s2 + $0x28] sm:$0xff] %vm280, %v305
    %322 = vst.msk [vmem:[%s2 + $0x30] sm:$0xff] %vm280, %v306
    %323 = vst.msk [vmem:[%s2 + $0x38] sm:$0xff] %vm280, %v307
    %324 = vst.msk [vmem:[%s2 + $0x40] sm:$0xff] %vm280, %v308
    %325 = vst.msk [vmem:[%s2 + $0x48] sm:$0xff] %vm280, %v309
    %326 = vst.msk [vmem:[%s2 + $0x50] sm:$0xff] %vm280, %v310
    %327 = vst.msk [vmem:[%s2 + $0x58] sm:$0xff] %vm280, %v311
    %328 = vst.msk [vmem:[%s2 + $0x60] sm:$0xff] %vm280, %v312
    %329 = vst.msk [vmem:[%s2 + $0x68] sm:$0xff] %vm280, %v313
    %330 = vst.msk [vmem:[%s2 + $0x70] sm:$0xff] %vm280, %v314
    %331 = vst.msk [vmem:[%s2 + $0x78] sm:$0xff] %vm280, %v315
  $region17: #{tpu_custom_call.1} parent=0 // pred_fallthru
    _
  // Predicated region
  $region18: #{tpu_custom_call.1} parent=0 // pred_check
    _
  $region19: #{tpu_custom_call.1} parent=0 // pred_check_branch
    %333 = sbr.rel (0) target = $region21
  $region20: #{tpu_custom_call.1} parent=0 // pred_region
    _
  $region21: #{tpu_custom_call.1} parent=0 // pred_fallthru
    _
  // Predicated region
  $region22: #{tpu_custom_call.1} parent=0 // pred_check
    _
  $region23: #{tpu_custom_call.1} parent=0 // pred_check_branch
    %335 = sbr.rel (0) target = $region25
  $region24: #{tpu_custom_call.1} parent=0 // pred_region
    _
  $region25: #{tpu_custom_call.1} parent=0 // pred_fallthru
    _

</llo_original>
